<compile_context>
chip_gen: v7x
topology: tpu7x:2x2x1
jax: 0.10.0
libtpu: 0.0.40
codegen_flags: <defaults>
</compile_context>

<pallas_src>
import functools

import jax
import jax.numpy as jnp
from jax.experimental import pallas as pl
from jax.experimental.pallas import tpu as pltpu

LANES = 128  # TPU vreg lane width; every weight block is padded to this width.


def _leaky_relu(x, slope=0.01):  # nn.LeakyReLU default negative_slope = 0.01
    return jnp.where(x > 0, x, slope * x)


def _round_up(v, m):
    return (v + m - 1) // m * m


def _build_gcn_inputs(x, edge_index, edge_weight, batching, num_graphs):
    """Glue: dense normalized adjacency (GCN norm, add_remaining_self_loops) + mean-pool matrix."""
    n = x.shape[0]
    src, dst = edge_index[0], edge_index[1]
    w = edge_weight.astype(jnp.float32)
    # A[i, j] = weight of edge j -> i (source_to_target flow, aggregated at target)
    a = jnp.zeros((n, n), jnp.float32).at[dst, src].add(w)
    # add_remaining_self_loops semantics: only nodes WITHOUT an existing self-loop
    # get a weight-1 self-loop (pre-existing self-loop weights are kept as-is).
    has_self = jnp.zeros((n,), jnp.float32).at[src].add(
        jnp.where(src == dst, 1.0, 0.0)) > 0
    a = a + jnp.diag(jnp.where(has_self, 0.0, 1.0))
    deg = a.sum(axis=1)                            # in-degree (incl. self-loop)
    dinv = jnp.where(deg > 0, jax.lax.rsqrt(deg), 0.0)
    ahat = dinv[:, None] * a * dinv[None, :]       # D^-1/2 (A + I) D^-1/2

    onehot = (batching[None, :] == jnp.arange(num_graphs)[:, None]).astype(jnp.float32)
    counts = onehot.sum(axis=1, keepdims=True)
    pool = onehot / jnp.maximum(counts, 1.0)       # [num_graphs, num_nodes], rows average
    return ahat, pool


def make_model(params, in_channels=4, gcn_nodes=16, dense_nodes=32, num_graphs=2):
    """Packs params once and returns a jitted forward(x, edge_index, edge_weight, batching)."""
    head = 2 * dense_nodes                   # fused Chi0|Rp width
    assert gcn_nodes <= LANES and head <= LANES and in_channels <= 8
    in_pad = _round_up(in_channels, 8)

    # Row offsets inside the packed slab (all multiples of 8 sublanes).
    # Every weight block spans the full 128-lane width (zero-padded).
    o_gc1 = 0                     # [in_pad, 128]  GCNConv1 W
    o_gc2 = o_gc1 + in_pad        # [128, 128]     GCNConv2 W
    o_h1 = o_gc2 + LANES          # [128, 128]     fused head layer 1  [c1 | r1]
    o_h2 = o_h1 + LANES           # [128, 128]     fused head layer 2  blockdiag(c2, r2)
    o_h3 = o_h2 + LANES           # [128, 128]     fused head layer 3  [c3;0 | 0;r3]
    o_b = o_h3 + LANES            # 5 bias rows
    total_rows = _round_up(o_b + 5, 8)

    def pack_params(ps):
        (gc1_w, gc1_b, gc2_w, gc2_b,
         c1_w, c1_b, c2_w, c2_b, c3_w, c3_b,
         r1_w, r1_b, r2_w, r2_b, r3_w, r3_b) = [jnp.asarray(p, jnp.float32) for p in ps]

        WB = jnp.zeros((total_rows, LANES), jnp.float32)
        # GCN weights
        WB = WB.at[o_gc1:o_gc1 + in_channels, 0:gcn_nodes].set(gc1_w)
        WB = WB.at[o_gc2:o_gc2 + gcn_nodes, 0:gcn_nodes].set(gc2_w)
        # fused head layer 1: [c1 | r1]
        WB = WB.at[o_h1:o_h1 + gcn_nodes, 0:dense_nodes].set(c1_w)
        WB = WB.at[o_h1:o_h1 + gcn_nodes, dense_nodes:head].set(r1_w)
        # fused head layer 2: block diagonal
        WB = WB.at[o_h2:o_h2 + dense_nodes, 0:dense_nodes].set(c2_w)
        WB = WB.at[o_h2 + dense_nodes:o_h2 + head, dense_nodes:head].set(r2_w)
        # fused head layer 3: columns 0 (Chi0) and 1 (Rp)
        WB = WB.at[o_h3:o_h3 + dense_nodes, 0:1].set(c3_w)
        WB = WB.at[o_h3 + dense_nodes:o_h3 + head, 1:2].set(r3_w)
        # biases (padded lanes stay zero -> padded activations stay exactly zero)
        WB = WB.at[o_b + 0, 0:gcn_nodes].set(gc1_b.reshape(-1))
        WB = WB.at[o_b + 1, 0:gcn_nodes].set(gc2_b.reshape(-1))
        WB = WB.at[o_b + 2, 0:dense_nodes].set(c1_b.reshape(-1))
        WB = WB.at[o_b + 2, dense_nodes:head].set(r1_b.reshape(-1))
        WB = WB.at[o_b + 3, 0:dense_nodes].set(c2_b.reshape(-1))
        WB = WB.at[o_b + 3, dense_nodes:head].set(r2_b.reshape(-1))
        WB = WB.at[o_b + 4, 0:1].set(c3_b.reshape(-1))
        WB = WB.at[o_b + 4, 1:2].set(r3_b.reshape(-1))
        return WB

    WB = pack_params(params)   # packed ONCE at model-build time, not per call

    def kernel(x_ref, ap_ref, wb_ref, out_ref, *, n):
        f32 = jnp.float32
        ahat = ap_ref[0:n, :]                      # [N, N]
        pool = ap_ref[n:n + num_graphs, :]         # [G, N]

        # ---- GCNConv1, reassociated: (A_hat @ X) @ W1 + b1, then LeakyReLU.
        t = jnp.dot(ahat, x_ref[...], preferred_element_type=f32)
        h = _leaky_relu(
            jnp.dot(t, wb_ref[o_gc1:o_gc1 + in_pad, :], preferred_element_type=f32)
            + wb_ref[o_b:o_b + 1, :])

        # ---- GCNConv2: A_hat @ (H @ W2) + b2
        t = jnp.dot(h, wb_ref[o_gc2:o_gc2 + LANES, :], preferred_element_type=f32)
        h = _leaky_relu(jnp.dot(ahat, t, preferred_element_type=f32)
                        + wb_ref[o_b + 1:o_b + 2, :])

        # ---- global mean pool: [G, N] @ [N, 128]
        pooled = jnp.dot(pool, h, preferred_element_type=f32)

        # ---- fused Chi0|Rp head: 3 matmuls, single lane-dense output store.
        z = _leaky_relu(jnp.dot(pooled, wb_ref[o_h1:o_h1 + LANES, :],
                                preferred_element_type=f32)
                        + wb_ref[o_b + 2:o_b + 3, :])
        z = _leaky_relu(jnp.dot(z, wb_ref[o_h2:o_h2 + LANES, :],
                                preferred_element_type=f32)
                        + wb_ref[o_b + 3:o_b + 4, :])
        out_ref[...] = (jnp.dot(z, wb_ref[o_h3:o_h3 + LANES, :],
                                preferred_element_type=f32)
                        + wb_ref[o_b + 4:o_b + 5, :])

    @jax.jit
    def forward(x, edge_index, edge_weight, batching):
        n = x.shape[0]
        ahat, pool = _build_gcn_inputs(x, edge_index, edge_weight, batching, num_graphs)
        ap = jnp.concatenate([ahat, pool], axis=0)            # [N+G, N], one DMA
        x_pad = jnp.zeros((n, in_pad), jnp.float32).at[:, :in_channels].set(
            x.astype(jnp.float32))

        # Advisory cost hint so XLA schedules the tiny custom call sensibly.
        flops = 2 * (n * n * in_pad + n * in_pad * LANES
                     + n * LANES * LANES + n * n * LANES
                     + num_graphs * n * LANES
                     + 3 * num_graphs * LANES * LANES)
        bytes_accessed = 4 * (n * in_pad + (n + num_graphs) * n
                              + total_rows * LANES + num_graphs * LANES)

        vmem = pl.BlockSpec(memory_space=pltpu.MemorySpace.VMEM)
        out = pl.pallas_call(
            functools.partial(kernel, n=n),
            out_shape=jax.ShapeDtypeStruct((num_graphs, LANES), jnp.float32),
            in_specs=[vmem, vmem, vmem],
            out_specs=vmem,
            cost_estimate=pl.CostEstimate(flops=flops, transcendentals=0,
                                          bytes_accessed=bytes_accessed),
        )(x_pad, ap, WB)
        return out[:, :2]   # lane-dense kernel output; slice the 2 real columns here

    return forward


def init_params(key, in_channels=4, gcn_nodes=16, dense_nodes=32):
    """Deterministic synthetic parameters. Weights stored as [in, out]; biases as [1, out]."""
    shapes = [
        (in_channels, gcn_nodes), (1, gcn_nodes),      # GCNConv1 W, b
        (gcn_nodes, gcn_nodes), (1, gcn_nodes),        # GCNConv2 W, b
        (gcn_nodes, dense_nodes), (1, dense_nodes),    # Chi0Dense1
        (dense_nodes, dense_nodes), (1, dense_nodes),  # Chi0Dense2
        (dense_nodes, 1), (1, 1),                      # Chi0Dense3
        (gcn_nodes, dense_nodes), (1, dense_nodes),    # RpDense1
        (dense_nodes, dense_nodes), (1, dense_nodes),  # RpDense2
        (dense_nodes, 1), (1, 1),                      # RpDense3
    ]
    keys = jax.random.split(key, len(shapes))
    return [0.1 * jax.random.normal(k, s, jnp.float32) for k, s in zip(keys, shapes)]


def reference_forward(x, edge_index, edge_weight, batching, params, num_graphs):
    """Pure-JAX reference mirroring the PyTorch forward semantics (unfused params)."""
    ahat, pool = _build_gcn_inputs(x, edge_index, edge_weight, batching, num_graphs)
    (gc1_w, gc1_b, gc2_w, gc2_b,
     c1_w, c1_b, c2_w, c2_b, c3_w, c3_b,
     r1_w, r1_b, r2_w, r2_b, r3_w, r3_b) = params
    h = _leaky_relu(ahat @ (x @ gc1_w) + gc1_b)
    h = _leaky_relu(ahat @ (h @ gc2_w) + gc2_b)
    pooled = pool @ h
    chi = _leaky_relu(pooled @ c1_w + c1_b)
    chi = _leaky_relu(chi @ c2_w + c2_b)
    chi = chi @ c3_w + c3_b
    rp = _leaky_relu(pooled @ r1_w + r1_b)
    rp = _leaky_relu(rp @ r2_w + r2_b)
    rp = rp @ r3_w + r3_b
    return jnp.concatenate([chi, rp], axis=1)


if __name__ == "__main__":
    key = jax.random.PRNGKey(0)
    k_x, k_src, k_dst, k_w, k_p = jax.random.split(key, 5)

    num_nodes, num_edges, num_graphs = 8, 12, 2
    in_channels, gcn_nodes, dense_nodes = 4, 16, 32

    x = jax.random.normal(k_x, (num_nodes, in_channels), jnp.float32)
    src = jax.random.randint(k_src, (num_edges,), 0, num_nodes, jnp.int32)
    dst = jax.random.randint(k_dst, (num_edges,), 0, num_nodes, jnp.int32)
    dst = jnp.where(dst == src, (dst + 1) % num_nodes, dst)   # avoid pre-existing self-loops
    edge_index = jnp.stack([src, dst], axis=0)
    edge_weight = jax.random.uniform(k_w, (num_edges,), jnp.float32, 0.5, 1.5)
    batching = jnp.array([0, 0, 0, 0, 1, 1, 1, 1], jnp.int32)

    params = init_params(k_p, in_channels, gcn_nodes, dense_nodes)

    forward = make_model(params, in_channels, gcn_nodes, dense_nodes, num_graphs)
    out = jax.block_until_ready(forward(x, edge_index, edge_weight, batching))

    ref = reference_forward(x, edge_index, edge_weight, batching, params, num_graphs)
    assert out.shape == (num_graphs, 2)
    assert jnp.allclose(out, ref, atol=1e-5, rtol=1e-5), (out, ref)

    print("KERNEL_OK")
</pallas_src>

<mosaic_0001>
module attributes {stable_mosaic.version = 11 : i64} {
  func.func @kernel(%arg0: memref<8x8xf32, #tpu.memory_space<vmem>>, %arg1: memref<10x8xf32, #tpu.memory_space<vmem>>, %arg2: memref<528x128xf32, #tpu.memory_space<vmem>>, %arg3: memref<2x128xf32, #tpu.memory_space<vmem>>) attributes {dimension_semantics = [], scalar_prefetch = 0 : i64, scratch_operands = 0 : i64, tpu.core_type = #tpu.core_type<tc>} {
    %c0 = arith.constant 0 : index
    %c0_0 = arith.constant 0 : index
    %0 = vector.load %arg1[%c0, %c0_0] : memref<10x8xf32, #tpu.memory_space<vmem>>, vector<8x8xf32>
    %c8 = arith.constant 8 : index
    %c0_1 = arith.constant 0 : index
    %1 = vector.load %arg1[%c8, %c0_1] : memref<10x8xf32, #tpu.memory_space<vmem>>, vector<2x8xf32>
    %c0_2 = arith.constant 0 : index
    %c0_3 = arith.constant 0 : index
    %2 = vector.load %arg0[%c0_2, %c0_3] : memref<8x8xf32, #tpu.memory_space<vmem>>, vector<8x8xf32>
    %cst = arith.constant dense<0.000000e+00> : vector<8x8xf32>
    %3 = tpu.matmul %0, %2, %cst {dimension_numbers = #tpu.dot_dimension_numbers<[1], [0], [0], [1], [0, 0, 1, 1], [], []>} : vector<8x8xf32>, vector<8x8xf32>, vector<8x8xf32> -> vector<8x8xf32>
    %c0_4 = arith.constant 0 : index
    %c0_5 = arith.constant 0 : index
    %4 = vector.load %arg2[%c0_4, %c0_5] : memref<528x128xf32, #tpu.memory_space<vmem>>, vector<8x128xf32>
    %cst_6 = arith.constant dense<0.000000e+00> : vector<8x128xf32>
    %5 = tpu.matmul %3, %4, %cst_6 {dimension_numbers = #tpu.dot_dimension_numbers<[1], [0], [0], [1], [0, 0, 1, 1], [], []>} : vector<8x8xf32>, vector<8x128xf32>, vector<8x128xf32> -> vector<8x128xf32>
    %c520 = arith.constant 520 : index
    %c0_7 = arith.constant 0 : index
    %6 = vector.load %arg2[%c520, %c0_7] : memref<528x128xf32, #tpu.memory_space<vmem>>, vector<1x128xf32>
    %7 = vector.broadcast %6 : vector<1x128xf32> to vector<8x128xf32>
    %8 = arith.addf %5, %7 : vector<8x128xf32>
    %cst_8 = arith.constant 0.000000e+00 : f32
    %9 = vector.broadcast %cst_8 : f32 to vector<8x128xf32>
    %10 = arith.cmpf ogt, %8, %9 : vector<8x128xf32>
    %cst_9 = arith.constant 0.00999999977 : f32
    %11 = vector.broadcast %cst_9 : f32 to vector<8x128xf32>
    %12 = arith.mulf %11, %8 : vector<8x128xf32>
    %13 = arith.select %10, %8, %12 : vector<8x128xi1>, vector<8x128xf32>
    %c8_10 = arith.constant 8 : index
    %c0_11 = arith.constant 0 : index
    %14 = vector.load %arg2[%c8_10, %c0_11] : memref<528x128xf32, #tpu.memory_space<vmem>>, vector<128x128xf32>
    %cst_12 = arith.constant dense<0.000000e+00> : vector<8x128xf32>
    %15 = tpu.matmul %13, %14, %cst_12 {dimension_numbers = #tpu.dot_dimension_numbers<[1], [0], [0], [1], [0, 0, 1, 1], [], []>} : vector<8x128xf32>, vector<128x128xf32>, vector<8x128xf32> -> vector<8x128xf32>
    %cst_13 = arith.constant dense<0.000000e+00> : vector<8x128xf32>
    %16 = tpu.matmul %0, %15, %cst_13 {dimension_numbers = #tpu.dot_dimension_numbers<[1], [0], [0], [1], [0, 0, 1, 1], [], []>} : vector<8x8xf32>, vector<8x128xf32>, vector<8x128xf32> -> vector<8x128xf32>
    %c521 = arith.constant 521 : index
    %c0_14 = arith.constant 0 : index
    %17 = vector.load %arg2[%c521, %c0_14] : memref<528x128xf32, #tpu.memory_space<vmem>>, vector<1x128xf32>
    %18 = vector.broadcast %17 : vector<1x128xf32> to vector<8x128xf32>
    %19 = arith.addf %16, %18 : vector<8x128xf32>
    %cst_15 = arith.constant 0.000000e+00 : f32
    %20 = vector.broadcast %cst_15 : f32 to vector<8x128xf32>
    %21 = arith.cmpf ogt, %19, %20 : vector<8x128xf32>
    %cst_16 = arith.constant 0.00999999977 : f32
    %22 = vector.broadcast %cst_16 : f32 to vector<8x128xf32>
    %23 = arith.mulf %22, %19 : vector<8x128xf32>
    %24 = arith.select %21, %19, %23 : vector<8x128xi1>, vector<8x128xf32>
    %cst_17 = arith.constant dense<0.000000e+00> : vector<2x128xf32>
    %25 = tpu.matmul %1, %24, %cst_17 {dimension_numbers = #tpu.dot_dimension_numbers<[1], [0], [0], [1], [0, 0, 1, 1], [], []>} : vector<2x8xf32>, vector<8x128xf32>, vector<2x128xf32> -> vector<2x128xf32>
    %c136 = arith.constant 136 : index
    %c0_18 = arith.constant 0 : index
    %26 = vector.load %arg2[%c136, %c0_18] : memref<528x128xf32, #tpu.memory_space<vmem>>, vector<128x128xf32>
    %cst_19 = arith.constant dense<0.000000e+00> : vector<2x128xf32>
    %27 = tpu.matmul %25, %26, %cst_19 {dimension_numbers = #tpu.dot_dimension_numbers<[1], [0], [0], [1], [0, 0, 1, 1], [], []>} : vector<2x128xf32>, vector<128x128xf32>, vector<2x128xf32> -> vector<2x128xf32>
    %c522 = arith.constant 522 : index
    %c0_20 = arith.constant 0 : index
    %28 = vector.load %arg2[%c522, %c0_20] : memref<528x128xf32, #tpu.memory_space<vmem>>, vector<1x128xf32>
    %29 = vector.broadcast %28 : vector<1x128xf32> to vector<2x128xf32>
    %30 = arith.addf %27, %29 : vector<2x128xf32>
    %cst_21 = arith.constant 0.000000e+00 : f32
    %31 = vector.broadcast %cst_21 : f32 to vector<2x128xf32>
    %32 = arith.cmpf ogt, %30, %31 : vector<2x128xf32>
    %cst_22 = arith.constant 0.00999999977 : f32
    %33 = vector.broadcast %cst_22 : f32 to vector<2x128xf32>
    %34 = arith.mulf %33, %30 : vector<2x128xf32>
    %35 = arith.select %32, %30, %34 : vector<2x128xi1>, vector<2x128xf32>
    %c264 = arith.constant 264 : index
    %c0_23 = arith.constant 0 : index
    %36 = vector.load %arg2[%c264, %c0_23] : memref<528x128xf32, #tpu.memory_space<vmem>>, vector<128x128xf32>
    %cst_24 = arith.constant dense<0.000000e+00> : vector<2x128xf32>
    %37 = tpu.matmul %35, %36, %cst_24 {dimension_numbers = #tpu.dot_dimension_numbers<[1], [0], [0], [1], [0, 0, 1, 1], [], []>} : vector<2x128xf32>, vector<128x128xf32>, vector<2x128xf32> -> vector<2x128xf32>
    %c523 = arith.constant 523 : index
    %c0_25 = arith.constant 0 : index
    %38 = vector.load %arg2[%c523, %c0_25] : memref<528x128xf32, #tpu.memory_space<vmem>>, vector<1x128xf32>
    %39 = vector.broadcast %38 : vector<1x128xf32> to vector<2x128xf32>
    %40 = arith.addf %37, %39 : vector<2x128xf32>
    %cst_26 = arith.constant 0.000000e+00 : f32
    %41 = vector.broadcast %cst_26 : f32 to vector<2x128xf32>
    %42 = arith.cmpf ogt, %40, %41 : vector<2x128xf32>
    %cst_27 = arith.constant 0.00999999977 : f32
    %43 = vector.broadcast %cst_27 : f32 to vector<2x128xf32>
    %44 = arith.mulf %43, %40 : vector<2x128xf32>
    %45 = arith.select %42, %40, %44 : vector<2x128xi1>, vector<2x128xf32>
    %c392 = arith.constant 392 : index
    %c0_28 = arith.constant 0 : index
    %46 = vector.load %arg2[%c392, %c0_28] : memref<528x128xf32, #tpu.memory_space<vmem>>, vector<128x128xf32>
    %cst_29 = arith.constant dense<0.000000e+00> : vector<2x128xf32>
    %47 = tpu.matmul %45, %46, %cst_29 {dimension_numbers = #tpu.dot_dimension_numbers<[1], [0], [0], [1], [0, 0, 1, 1], [], []>} : vector<2x128xf32>, vector<128x128xf32>, vector<2x128xf32> -> vector<2x128xf32>
    %c524 = arith.constant 524 : index
    %c0_30 = arith.constant 0 : index
    %48 = vector.load %arg2[%c524, %c0_30] : memref<528x128xf32, #tpu.memory_space<vmem>>, vector<1x128xf32>
    %49 = vector.broadcast %48 : vector<1x128xf32> to vector<2x128xf32>
    %50 = arith.addf %47, %49 : vector<2x128xf32>
    %c0_31 = arith.constant 0 : index
    %c0_32 = arith.constant 0 : index
    %51 = vector.load %arg3[%c0_31, %c0_32] : memref<2x128xf32, #tpu.memory_space<vmem>>, vector<2x128xf32>
    tpu.vector_store %arg3[%c0_31, %c0_32], %50 {strides = array<i32>} : memref<2x128xf32, #tpu.memory_space<vmem>>, vector<2x128xf32>,
    return
  }
}

</mosaic_0001>

<llo_original>
// kernel: forward.1
$region0: #{forward.1}
  #allocation0 [shape = 'u32[]', space=smem, size = 0x4, offset = 0x4, fixed_abs, tag = 'smem constant byte address 0x4 - core index']
  #allocation1 [shape = 'u32[144,128]{1,0:T(1,128)}', space=vmem, size = 0x12000, scoped, tag = 'internal scratch']
  %s0 = inlined_call_operand.vmem [shape: f32[8,8], index: 0, kind: input, shape index: {}]
  %s1 = inlined_call_operand.vmem [shape: f32[10,8], index: 1, kind: input, shape index: {}]
  %s2 = inlined_call_operand.vmem [shape: f32[528,128], index: 2, kind: input, shape index: {}]
  %s3 = inlined_call_operand.hbm [shape: f32[2,128], index: 3, kind: output, shape index: {}]
  %s4 = sld [smem:[#allocation0]]
  $region22: #{forward.1} parent=0
    _
  %s6 = ssub.s32 1, %s4
  %s7 = scalar_select 0, %s6, %s4
  $region1: #{forward.1} parent=0
    #allocation2 [shape = 'u8[1024]{0}', space=vmem, size = 0x400, scoped, tag = 'output window, operand 0, single buffered']
    #allocation3 [shape = 's32[1]{0}', space=sflag, size = 0x4, scoped, tag = 'scoped memory for forward.1']
    %8 = vsyncpa [#allocation3], 0
    // Predicated region
    $region2: #{forward.1} parent=1 // pred_check
      _
    $region3: #{forward.1} parent=1 // pred_check_branch
      %10 = sbr.rel (0) target = $region5
    $region4: #{forward.1} parent=1 // pred_region
      _
    $region5: #{forward.1} parent=1 // pred_fallthru
      _
    // Predicated region
    $region6: #{forward.1} parent=1 // pred_check
      _
    $region7: #{forward.1} parent=1 // pred_check_branch
      %12 = sbr.rel (0) target = $region9
    $region8: #{forward.1} parent=1 // pred_region
      _
    $region9: #{forward.1} parent=1 // pred_fallthru
      _
    // Predicated region
    $region10: #{forward.1} parent=1 // pred_check
      _
    $region11: #{forward.1} parent=1 // pred_check_branch
      %14 = sbr.rel (0) target = $region13
    $region12: #{forward.1} parent=1 // pred_region
      _
    $region13: #{forward.1} parent=1 // pred_fallthru
      _
    %v15 = vld [vmem:[%s1] sm:$0xff]
    %v16 = vld [vmem:[%s1 + $0x8] sm:$0x3]
    %v17 = vld [vmem:[%s0] sm:$0xff]
    %vm18 = vcmask 64512
    %v20 = vsel %vm18, %v15, 0
    %22 = vmatprep.subr.mxu0 0.0
    %23 = vmatpush1.msra.mxu0 %v17
    %24 = vmatprep.subr.mxu0 0.0
    %25 = vmatpush1.msra.mxu0 0.0
    %26 = vmatprep.subr.mxu0 0.0
    %27 = vmatpush1.msra.mxu0 0.0
    %28 = vmatprep.subr.mxu0 0.0
    %29 = vmatpush1.msra.mxu0 0.0
    %30 = vmatprep.subr.mxu0 0.0
    %31 = vmatpush1.msra.mxu0 0.0
    %32 = vmatprep.subr.mxu0 0.0
    %33 = vmatpush1.msra.mxu0 0.0
    %34 = vmatprep.subr.mxu0 0.0
    %35 = vmatpush1.msra.mxu0 0.0
    %36 = vmatprep.subr.mxu0 0.0
    %37 = vmatpush1.msra.mxu0 0.0
    %38 = vmatprep.subr.mxu0 0.0
    %39 = vmatpush1.msra.mxu0 0.0
    %40 = vmatprep.subr.mxu0 0.0
    %41 = vmatpush1.msra.mxu0 0.0
    %42 = vmatprep.subr.mxu0 0.0
    %43 = vmatpush1.msra.mxu0 0.0
    %44 = vmatprep.subr.mxu0 0.0
    %45 = vmatpush1.msra.mxu0 0.0
    %46 = vmatprep.subr.mxu0 0.0
    %47 = vmatpush1.msra.mxu0 0.0
    %48 = vmatprep.subr.mxu0 0.0
    %49 = vmatpush1.msra.mxu0 0.0
    %50 = vmatprep.subr.mxu0 0.0
    %51 = vmatpush1.msra.mxu0 0.0
    %52 = vmatprep.subr.mxu0 0.0
    %53 = vmatpush1.msra.mxu0 0.0
    %54 = vmatprep.subr.mxu0 0.0
    %55 = vmatpush1.msra.mxu0 0.0
    %56 = vmatprep.subr.mxu0 0.0
    %57 = vmatpush1.msra.mxu0 0.0
    %58 = vmatprep.subr.mxu0 0.0
    %59 = vmatpush1.msra.mxu0 0.0
    %60 = vmatprep.subr.mxu0 0.0
    %61 = vmatpush1.msra.mxu0 0.0
    %62 = vmatprep.subr.mxu0 0.0
    %63 = vmatpush1.msra.mxu0 0.0
    %64 = vmatprep.subr.mxu0 0.0
    %65 = vmatpush1.msra.mxu0 0.0
    %66 = vmatprep.subr.mxu0 0.0
    %67 = vmatpush1.msra.mxu0 0.0
    %68 = vmatprep.subr.mxu0 0.0
    %69 = vmatpush1.msra.mxu0 0.0
    %70 = vmatprep.subr.mxu0 0.0
    %71 = vmatpush1.msra.mxu0 0.0
    %72 = vmatprep.subr.mxu0 0.0
    %73 = vmatpush1.msra.mxu0 0.0
    %74 = vmatprep.subr.mxu0 0.0
    %75 = vmatpush1.msra.mxu0 0.0
    %76 = vmatprep.subr.mxu0 0.0
    %77 = vmatpush1.msra.mxu0 0.0
    %78 = vmatprep.subr.mxu0 0.0
    %79 = vmatpush1.msra.mxu0 0.0
    %80 = vmatprep.subr.mxu0 0.0
    %81 = vmatpush1.msra.mxu0 0.0
    %82 = vmatprep.subr.mxu0 0.0
    %83 = vmatpush1.msra.mxu0 0.0
    %84 = vmatprep.subr.mxu0 0.0
    %85 = vmatpush1.msra.mxu0 0.0
    %86 = vmatprep.mubr.f32.mxu0 0.0
    %87 = vmatmul.mubr.f32.gmra.mrb[0].mxu0 %v20
    %v88 = vpop.f32.mrb[0].mxu0
    %v89 = vadd.f32 0.0, %v88
    %v90 = vpop.f32.mrb[0].mxu0
    %91 = vdwg.mxu0
    %v92 = vld [vmem:[%s2] sm:$0xff]
    %v93 = vld [vmem:[%s2 + $0x208] sm:$0x1]
    %v94 = vlaneseq
    %v95 = vshrl.u32 %v94, 7
    %v96 = vsub.s32 0, %v95
    %v97 = vrot.slane %v93, %v96
    %v99 = vsel %vm18, %v89, 0
    %101 = vmatprep.subr.mxu0 0.0
    %102 = vmatpush1.msra.mxu0 %v92
    %103 = vmatprep.subr.mxu0 0.0
    %104 = vmatpush1.msra.mxu0 0.0
    %105 = vmatprep.subr.mxu0 0.0
    %106 = vmatpush1.msra.mxu0 0.0
    %107 = vmatprep.subr.mxu0 0.0
    %108 = vmatpush1.msra.mxu0 0.0
    %109 = vmatprep.subr.mxu0 0.0
    %110 = vmatpush1.msra.mxu0 0.0
    %111 = vmatprep.subr.mxu0 0.0
    %112 = vmatpush1.msra.mxu0 0.0
    %113 = vmatprep.subr.mxu0 0.0
    %114 = vmatpush1.msra.mxu0 0.0
    %115 = vmatprep.subr.mxu0 0.0
    %116 = vmatpush1.msra.mxu0 0.0
    %117 = vmatprep.subr.mxu0 0.0
    %118 = vmatpush1.msra.mxu0 0.0
    %119 = vmatprep.subr.mxu0 0.0
    %120 = vmatpush1.msra.mxu0 0.0
    %121 = vmatprep.subr.mxu0 0.0
    %122 = vmatpush1.msra.mxu0 0.0
    %123 = vmatprep.subr.mxu0 0.0
    %124 = vmatpush1.msra.mxu0 0.0
    %125 = vmatprep.subr.mxu0 0.0
    %126 = vmatpush1.msra.mxu0 0.0
    %127 = vmatprep.subr.mxu0 0.0
    %128 = vmatpush1.msra.mxu0 0.0
    %129 = vmatprep.subr.mxu0 0.0
    %130 = vmatpush1.msra.mxu0 0.0
    %131 = vmatprep.subr.mxu0 0.0
    %132 = vmatpush1.msra.mxu0 0.0
    %133 = vmatprep.subr.mxu0 0.0
    %134 = vmatpush1.msra.mxu0 0.0
    %135 = vmatprep.subr.mxu0 0.0
    %136 = vmatpush1.msra.mxu0 0.0
    %137 = vmatprep.subr.mxu0 0.0
    %138 = vmatpush1.msra.mxu0 0.0
    %139 = vmatprep.subr.mxu0 0.0
    %140 = vmatpush1.msra.mxu0 0.0
    %141 = vmatprep.subr.mxu0 0.0
    %142 = vmatpush1.msra.mxu0 0.0
    %143 = vmatprep.subr.mxu0 0.0
    %144 = vmatpush1.msra.mxu0 0.0
    %145 = vmatprep.subr.mxu0 0.0
    %146 = vmatpush1.msra.mxu0 0.0
    %147 = vmatprep.subr.mxu0 0.0
    %148 = vmatpush1.msra.mxu0 0.0
    %149 = vmatprep.subr.mxu0 0.0
    %150 = vmatpush1.msra.mxu0 0.0
    %151 = vmatprep.subr.mxu0 0.0
    %152 = vmatpush1.msra.mxu0 0.0
    %153 = vmatprep.subr.mxu0 0.0
    %154 = vmatpush1.msra.mxu0 0.0
    %155 = vmatprep.subr.mxu0 0.0
    %156 = vmatpush1.msra.mxu0 0.0
    %157 = vmatprep.subr.mxu0 0.0
    %158 = vmatpush1.msra.mxu0 0.0
    %159 = vmatprep.subr.mxu0 0.0
    %160 = vmatpush1.msra.mxu0 0.0
    %161 = vmatprep.subr.mxu0 0.0
    %162 = vmatpush1.msra.mxu0 0.0
    %163 = vmatprep.subr.mxu0 0.0
    %164 = vmatpush1.msra.mxu0 0.0
    %165 = vmatprep.mubr.f32.mxu0 0.0
    %166 = vmatmul.mubr.f32.gmra.mrb[0].mxu0 %v99
    %v167 = vpop.f32.mrb[0].mxu0
    %v168 = vadd.f32 %v97, %v167
    %v169 = vpop.f32.mrb[0].mxu0
    %170 = vdwg.mxu0
    %vm171 = vcmp.gt.f32.partialorder %v168, 0.0
    %v172 = vmul.f32 %v168, 0.01
    %v173 = vsel %vm171, %v168, %v172
    %v174 = vld [vmem:[%s2 + $0x8] sm:$0xff]
    %v175 = vld [vmem:[%s2 + $0x10] sm:$0xff]
    %v176 = vld [vmem:[%s2 + $0x18] sm:$0xff]
    %v177 = vld [vmem:[%s2 + $0x20] sm:$0xff]
    %v178 = vld [vmem:[%s2 + $0x28] sm:$0xff]
    %v179 = vld [vmem:[%s2 + $0x30] sm:$0xff]
    %v180 = vld [vmem:[%s2 + $0x38] sm:$0xff]
    %v181 = vld [vmem:[%s2 + $0x40] sm:$0xff]
    %v182 = vld [vmem:[%s2 + $0x48] sm:$0xff]
    %v183 = vld [vmem:[%s2 + $0x50] sm:$0xff]
    %v184 = vld [vmem:[%s2 + $0x58] sm:$0xff]
    %v185 = vld [vmem:[%s2 + $0x60] sm:$0xff]
    %v186 = vld [vmem:[%s2 + $0x68] sm:$0xff]
    %v187 = vld [vmem:[%s2 + $0x70] sm:$0xff]
    %v188 = vld [vmem:[%s2 + $0x78] sm:$0xff]
    %v189 = vld [vmem:[%s2 + $0x80] sm:$0xff]
    %190 = vmatprep.subr.mxu0 0.0
    %191 = vmatpush1.msra.mxu0 %v174
    %192 = vmatprep.subr.mxu0 0.0
    %193 = vmatpush1.msra.mxu0 %v175
    %194 = vmatprep.subr.mxu0 0.0
    %195 = vmatpush1.msra.mxu0 %v176
    %196 = vmatprep.subr.mxu0 0.0
    %197 = vmatpush1.msra.mxu0 %v177
    %198 = vmatprep.subr.mxu0 0.0
    %199 = vmatpush1.msra.mxu0 %v178
    %200 = vmatprep.subr.mxu0 0.0
    %201 = vmatpush1.msra.mxu0 %v179
    %202 = vmatprep.subr.mxu0 0.0
    %203 = vmatpush1.msra.mxu0 %v180
    %204 = vmatprep.subr.mxu0 0.0
    %205 = vmatpush1.msra.mxu0 %v181
    %206 = vmatprep.subr.mxu0 0.0
    %207 = vmatpush1.msra.mxu0 %v182
    %208 = vmatprep.subr.mxu0 0.0
    %209 = vmatpush1.msra.mxu0 %v183
    %210 = vmatprep.subr.mxu0 0.0
    %211 = vmatpush1.msra.mxu0 %v184
    %212 = vmatprep.subr.mxu0 0.0
    %213 = vmatpush1.msra.mxu0 %v185
    %214 = vmatprep.subr.mxu0 0.0
    %215 = vmatpush1.msra.mxu0 %v186
    %216 = vmatprep.subr.mxu0 0.0
    %217 = vmatpush1.msra.mxu0 %v187
    %218 = vmatprep.subr.mxu0 0.0
    %219 = vmatpush1.msra.mxu0 %v188
    %220 = vmatprep.subr.mxu0 0.0
    %221 = vmatpush1.msra.mxu0 %v189
    %222 = vmatprep.subr.mxu0 0.0
    %223 = vmatpush1.msra.mxu0 0.0
    %224 = vmatprep.subr.mxu0 0.0
    %225 = vmatpush1.msra.mxu0 0.0
    %226 = vmatprep.subr.mxu0 0.0
    %227 = vmatpush1.msra.mxu0 0.0
    %228 = vmatprep.subr.mxu0 0.0
    %229 = vmatpush1.msra.mxu0 0.0
    %230 = vmatprep.subr.mxu0 0.0
    %231 = vmatpush1.msra.mxu0 0.0
    %232 = vmatprep.subr.mxu0 0.0
    %233 = vmatpush1.msra.mxu0 0.0
    %234 = vmatprep.subr.mxu0 0.0
    %235 = vmatpush1.msra.mxu0 0.0
    %236 = vmatprep.subr.mxu0 0.0
    %237 = vmatpush1.msra.mxu0 0.0
    %238 = vmatprep.subr.mxu0 0.0
    %239 = vmatpush1.msra.mxu0 0.0
    %240 = vmatprep.subr.mxu0 0.0
    %241 = vmatpush1.msra.mxu0 0.0
    %242 = vmatprep.subr.mxu0 0.0
    %243 = vmatpush1.msra.mxu0 0.0
    %244 = vmatprep.subr.mxu0 0.0
    %245 = vmatpush1.msra.mxu0 0.0
    %246 = vmatprep.subr.mxu0 0.0
    %247 = vmatpush1.msra.mxu0 0.0
    %248 = vmatprep.subr.mxu0 0.0
    %249 = vmatpush1.msra.mxu0 0.0
    %250 = vmatprep.subr.mxu0 0.0
    %251 = vmatpush1.msra.mxu0 0.0
    %252 = vmatprep.subr.mxu0 0.0
    %253 = vmatpush1.msra.mxu0 0.0
    %254 = vmatprep.mubr.f32.mxu0 0.0
    %255 = vmatmul.mubr.f32.gmra.mrb[0].mxu0 %v173
    %v256 = vpop.f32.mrb[0].mxu0
    %v257 = vadd.f32 0.0, %v256
    %v258 = vpop.f32.mrb[0].mxu0
    %259 = vdwg.mxu0
    %v260 = vld [vmem:[%s2 + $0x209] sm:$0x1]
    %v261 = vlaneseq
    %v262 = vshrl.u32 %v261, 7
    %v263 = vsub.s32 0, %v262
    %v264 = vrot.slane %v260, %v263
    %265 = vmatprep.subr.mxu0 0.0
    %266 = vmatpush1.msra.mxu0 %v257
    %267 = vmatprep.subr.mxu0 0.0
    %268 = vmatpush1.msra.mxu0 0.0
    %269 = vmatprep.subr.mxu0 0.0
    %270 = vmatpush1.msra.mxu0 0.0
    %271 = vmatprep.subr.mxu0 0.0
    %272 = vmatpush1.msra.mxu0 0.0
    %273 = vmatprep.subr.mxu0 0.0
    %274 = vmatpush1.msra.mxu0 0.0
    %275 = vmatprep.subr.mxu0 0.0
    %276 = vmatpush1.msra.mxu0 0.0
    %277 = vmatprep.subr.mxu0 0.0
    %278 = vmatpush1.msra.mxu0 0.0
    %279 = vmatprep.subr.mxu0 0.0
    %280 = vmatpush1.msra.mxu0 0.0
    %281 = vmatprep.subr.mxu0 0.0
    %282 = vmatpush1.msra.mxu0 0.0
    %283 = vmatprep.subr.mxu0 0.0
    %284 = vmatpush1.msra.mxu0 0.0
    %285 = vmatprep.subr.mxu0 0.0
    %286 = vmatpush1.msra.mxu0 0.0
    %287 = vmatprep.subr.mxu0 0.0
    %288 = vmatpush1.msra.mxu0 0.0
    %289 = vmatprep.subr.mxu0 0.0
    %290 = vmatpush1.msra.mxu0 0.0
    %291 = vmatprep.subr.mxu0 0.0
    %292 = vmatpush1.msra.mxu0 0.0
    %293 = vmatprep.subr.mxu0 0.0
    %294 = vmatpush1.msra.mxu0 0.0
    %295 = vmatprep.subr.mxu0 0.0
    %296 = vmatpush1.msra.mxu0 0.0
    %297 = vmatprep.subr.mxu0 0.0
    %298 = vmatpush1.msra.mxu0 0.0
    %299 = vmatprep.subr.mxu0 0.0
    %300 = vmatpush1.msra.mxu0 0.0
    %301 = vmatprep.subr.mxu0 0.0
    %302 = vmatpush1.msra.mxu0 0.0
    %303 = vmatprep.subr.mxu0 0.0
    %304 = vmatpush1.msra.mxu0 0.0
    %305 = vmatprep.subr.mxu0 0.0
    %306 = vmatpush1.msra.mxu0 0.0
    %307 = vmatprep.subr.mxu0 0.0
    %308 = vmatpush1.msra.mxu0 0.0
    %309 = vmatprep.subr.mxu0 0.0
    %310 = vmatpush1.msra.mxu0 0.0
    %311 = vmatprep.subr.mxu0 0.0
    %312 = vmatpush1.msra.mxu0 0.0
    %313 = vmatprep.subr.mxu0 0.0
    %314 = vmatpush1.msra.mxu0 0.0
    %315 = vmatprep.subr.mxu0 0.0
    %316 = vmatpush1.msra.mxu0 0.0
    %317 = vmatprep.subr.mxu0 0.0
    %318 = vmatpush1.msra.mxu0 0.0
    %319 = vmatprep.subr.mxu0 0.0
    %320 = vmatpush1.msra.mxu0 0.0
    %321 = vmatprep.subr.mxu0 0.0
    %322 = vmatpush1.msra.mxu0 0.0
    %323 = vmatprep.subr.mxu0 0.0
    %324 = vmatpush1.msra.mxu0 0.0
    %325 = vmatprep.subr.mxu0 0.0
    %326 = vmatpush1.msra.mxu0 0.0
    %327 = vmatprep.subr.mxu0 0.0
    %328 = vmatpush1.msra.mxu0 0.0
    %329 = vmatprep.mubr.f32.mxu0 0.0
    %330 = vmatmul.mubr.f32.gmra.mrb[0].mxu0 %v20
    %v331 = vpop.f32.mrb[0].mxu0
    %v332 = vadd.f32 %v264, %v331
    %v333 = vpop.f32.mrb[0].mxu0
    %334 = vdwg.mxu0
    %vm335 = vcmp.gt.f32.partialorder %v332, 0.0
    %v336 = vmul.f32 %v332, 0.01
    %v337 = vsel %vm335, %v332, %v336
    %v339 = vsel %vm18, %v16, 0
    %341 = vmatprep.subr.mxu0 0.0
    %342 = vmatpush1.msra.mxu0 %v337
    %343 = vmatprep.subr.mxu0 0.0
    %344 = vmatpush1.msra.mxu0 0.0
    %345 = vmatprep.subr.mxu0 0.0
    %346 = vmatpush1.msra.mxu0 0.0
    %347 = vmatprep.subr.mxu0 0.0
    %348 = vmatpush1.msra.mxu0 0.0
    %349 = vmatprep.subr.mxu0 0.0
    %350 = vmatpush1.msra.mxu0 0.0
    %351 = vmatprep.subr.mxu0 0.0
    %352 = vmatpush1.msra.mxu0 0.0
    %353 = vmatprep.subr.mxu0 0.0
    %354 = vmatpush1.msra.mxu0 0.0
    %355 = vmatprep.subr.mxu0 0.0
    %356 = vmatpush1.msra.mxu0 0.0
    %357 = vmatprep.subr.mxu0 0.0
    %358 = vmatpush1.msra.mxu0 0.0
    %359 = vmatprep.subr.mxu0 0.0
    %360 = vmatpush1.msra.mxu0 0.0
    %361 = vmatprep.subr.mxu0 0.0
    %362 = vmatpush1.msra.mxu0 0.0
    %363 = vmatprep.subr.mxu0 0.0
    %364 = vmatpush1.msra.mxu0 0.0
    %365 = vmatprep.subr.mxu0 0.0
    %366 = vmatpush1.msra.mxu0 0.0
    %367 = vmatprep.subr.mxu0 0.0
    %368 = vmatpush1.msra.mxu0 0.0
    %369 = vmatprep.subr.mxu0 0.0
    %370 = vmatpush1.msra.mxu0 0.0
    %371 = vmatprep.subr.mxu0 0.0
    %372 = vmatpush1.msra.mxu0 0.0
    %373 = vmatprep.subr.mxu0 0.0
    %374 = vmatpush1.msra.mxu0 0.0
    %375 = vmatprep.subr.mxu0 0.0
    %376 = vmatpush1.msra.mxu0 0.0
    %377 = vmatprep.subr.mxu0 0.0
    %378 = vmatpush1.msra.mxu0 0.0
    %379 = vmatprep.subr.mxu0 0.0
    %380 = vmatpush1.msra.mxu0 0.0
    %381 = vmatprep.subr.mxu0 0.0
    %382 = vmatpush1.msra.mxu0 0.0
    %383 = vmatprep.subr.mxu0 0.0
    %384 = vmatpush1.msra.mxu0 0.0
    %385 = vmatprep.subr.mxu0 0.0
    %386 = vmatpush1.msra.mxu0 0.0
    %387 = vmatprep.subr.mxu0 0.0
    %388 = vmatpush1.msra.mxu0 0.0
    %389 = vmatprep.subr.mxu0 0.0
    %390 = vmatpush1.msra.mxu0 0.0
    %391 = vmatprep.subr.mxu0 0.0
    %392 = vmatpush1.msra.mxu0 0.0
    %393 = vmatprep.subr.mxu0 0.0
    %394 = vmatpush1.msra.mxu0 0.0
    %395 = vmatprep.subr.mxu0 0.0
    %396 = vmatpush1.msra.mxu0 0.0
    %397 = vmatprep.subr.mxu0 0.0
    %398 = vmatpush1.msra.mxu0 0.0
    %399 = vmatprep.subr.mxu0 0.0
    %400 = vmatpush1.msra.mxu0 0.0
    %401 = vmatprep.subr.mxu0 0.0
    %402 = vmatpush1.msra.mxu0 0.0
    %403 = vmatprep.subr.mxu0 0.0
    %404 = vmatpush1.msra.mxu0 0.0
    %405 = vmatprep.mubr.f32.mxu0 0.0
    %406 = vmatmul.mubr.f32.gmra.mrb[0].mxu0 %v339
    %v407 = vpop.f32.mrb[0].mxu0
    %v408 = vadd.f32 0.0, %v407
    %v409 = vpop.f32.mrb[0].mxu0
    %410 = vdwg.mxu0
    %v411 = vld [vmem:[%s2 + $0x88] sm:$0xff]
    %v412 = vld [vmem:[%s2 + $0x90] sm:$0xff]
    %v413 = vld [vmem:[%s2 + $0x98] sm:$0xff]
    %v414 = vld [vmem:[%s2 + $0xa0] sm:$0xff]
    %v415 = vld [vmem:[%s2 + $0xa8] sm:$0xff]
    %v416 = vld [vmem:[%s2 + $0xb0] sm:$0xff]
    %v417 = vld [vmem:[%s2 + $0xb8] sm:$0xff]
    %v418 = vld [vmem:[%s2 + $0xc0] sm:$0xff]
    %v419 = vld [vmem:[%s2 + $0xc8] sm:$0xff]
    %v420 = vld [vmem:[%s2 + $0xd0] sm:$0xff]
    %v421 = vld [vmem:[%s2 + $0xd8] sm:$0xff]
    %v422 = vld [vmem:[%s2 + $0xe0] sm:$0xff]
    %v423 = vld [vmem:[%s2 + $0xe8] sm:$0xff]
    %v424 = vld [vmem:[%s2 + $0xf0] sm:$0xff]
    %v425 = vld [vmem:[%s2 + $0xf8] sm:$0xff]
    %v426 = vld [vmem:[%s2 + $0x100] sm:$0xff]
    %v427 = vld [vmem:[%s2 + $0x20a] sm:$0x1]
    %v428 = vlaneseq
    %v429 = vshrl.u32 %v428, 7
    %v430 = vsub.s32 0, %v429
    %v431 = vrot.slane %v427, %v430
    %432 = vmatprep.subr.mxu0 0.0
    %433 = vmatpush1.msra.mxu0 %v411
    %434 = vmatprep.subr.mxu0 0.0
    %435 = vmatpush1.msra.mxu0 %v412
    %436 = vmatprep.subr.mxu0 0.0
    %437 = vmatpush1.msra.mxu0 %v413
    %438 = vmatprep.subr.mxu0 0.0
    %439 = vmatpush1.msra.mxu0 %v414
    %440 = vmatprep.subr.mxu0 0.0
    %441 = vmatpush1.msra.mxu0 %v415
    %442 = vmatprep.subr.mxu0 0.0
    %443 = vmatpush1.msra.mxu0 %v416
    %444 = vmatprep.subr.mxu0 0.0
    %445 = vmatpush1.msra.mxu0 %v417
    %446 = vmatprep.subr.mxu0 0.0
    %447 = vmatpush1.msra.mxu0 %v418
    %448 = vmatprep.subr.mxu0 0.0
    %449 = vmatpush1.msra.mxu0 %v419
    %450 = vmatprep.subr.mxu0 0.0
    %451 = vmatpush1.msra.mxu0 %v420
    %452 = vmatprep.subr.mxu0 0.0
    %453 = vmatpush1.msra.mxu0 %v421
    %454 = vmatprep.subr.mxu0 0.0
    %455 = vmatpush1.msra.mxu0 %v422
    %456 = vmatprep.subr.mxu0 0.0
    %457 = vmatpush1.msra.mxu0 %v423
    %458 = vmatprep.subr.mxu0 0.0
    %459 = vmatpush1.msra.mxu0 %v424
    %460 = vmatprep.subr.mxu0 0.0
    %461 = vmatpush1.msra.mxu0 %v425
    %462 = vmatprep.subr.mxu0 0.0
    %463 = vmatpush1.msra.mxu0 %v426
    %464 = vmatprep.subr.mxu0 0.0
    %465 = vmatpush1.msra.mxu0 0.0
    %466 = vmatprep.subr.mxu0 0.0
    %467 = vmatpush1.msra.mxu0 0.0
    %468 = vmatprep.subr.mxu0 0.0
    %469 = vmatpush1.msra.mxu0 0.0
    %470 = vmatprep.subr.mxu0 0.0
    %471 = vmatpush1.msra.mxu0 0.0
    %472 = vmatprep.subr.mxu0 0.0
    %473 = vmatpush1.msra.mxu0 0.0
    %474 = vmatprep.subr.mxu0 0.0
    %475 = vmatpush1.msra.mxu0 0.0
    %476 = vmatprep.subr.mxu0 0.0
    %477 = vmatpush1.msra.mxu0 0.0
    %478 = vmatprep.subr.mxu0 0.0
    %479 = vmatpush1.msra.mxu0 0.0
    %480 = vmatprep.subr.mxu0 0.0
    %481 = vmatpush1.msra.mxu0 0.0
    %482 = vmatprep.subr.mxu0 0.0
    %483 = vmatpush1.msra.mxu0 0.0
    %484 = vmatprep.subr.mxu0 0.0
    %485 = vmatpush1.msra.mxu0 0.0
    %486 = vmatprep.subr.mxu0 0.0
    %487 = vmatpush1.msra.mxu0 0.0
    %488 = vmatprep.subr.mxu0 0.0
    %489 = vmatpush1.msra.mxu0 0.0
    %490 = vmatprep.subr.mxu0 0.0
    %491 = vmatpush1.msra.mxu0 0.0
    %492 = vmatprep.subr.mxu0 0.0
    %493 = vmatpush1.msra.mxu0 0.0
    %494 = vmatprep.subr.mxu0 0.0
    %495 = vmatpush1.msra.mxu0 0.0
    %496 = vmatprep.mubr.f32.mxu0 0.0
    %497 = vmatmul.mubr.f32.gmra.mrb[0].mxu0 %v408
    %v498 = vpop.f32.mrb[0].mxu0
    %v499 = vadd.f32 %v431, %v498
    %v500 = vpop.f32.mrb[0].mxu0
    %501 = vdwg.mxu0
    %vm502 = vcmp.gt.f32.partialorder %v499, 0.0
    %v503 = vmul.f32 %v499, 0.01
    %v504 = vsel %vm502, %v499, %v503
    %v505 = vld [vmem:[%s2 + $0x108] sm:$0xff]
    %v506 = vld [vmem:[%s2 + $0x110] sm:$0xff]
    %v507 = vld [vmem:[%s2 + $0x118] sm:$0xff]
    %v508 = vld [vmem:[%s2 + $0x120] sm:$0xff]
    %v509 = vld [vmem:[%s2 + $0x128] sm:$0xff]
    %v510 = vld [vmem:[%s2 + $0x130] sm:$0xff]
    %v511 = vld [vmem:[%s2 + $0x138] sm:$0xff]
    %v512 = vld [vmem:[%s2 + $0x140] sm:$0xff]
    %v513 = vld [vmem:[%s2 + $0x148] sm:$0xff]
    %v514 = vld [vmem:[%s2 + $0x150] sm:$0xff]
    %v515 = vld [vmem:[%s2 + $0x158] sm:$0xff]
    %v516 = vld [vmem:[%s2 + $0x160] sm:$0xff]
    %v517 = vld [vmem:[%s2 + $0x168] sm:$0xff]
    %v518 = vld [vmem:[%s2 + $0x170] sm:$0xff]
    %v519 = vld [vmem:[%s2 + $0x178] sm:$0xff]
    %v520 = vld [vmem:[%s2 + $0x180] sm:$0xff]
    %v521 = vld [vmem:[%s2 + $0x20b] sm:$0x1]
    %v522 = vlaneseq
    %v523 = vshrl.u32 %v522, 7
    %v524 = vsub.s32 0, %v523
    %v525 = vrot.slane %v521, %v524
    %526 = vmatprep.subr.mxu0 0.0
    %527 = vmatpush1.msra.mxu0 %v505
    %528 = vmatprep.subr.mxu0 0.0
    %529 = vmatpush1.msra.mxu0 %v506
    %530 = vmatprep.subr.mxu0 0.0
    %531 = vmatpush1.msra.mxu0 %v507
    %532 = vmatprep.subr.mxu0 0.0
    %533 = vmatpush1.msra.mxu0 %v508
    %534 = vmatprep.subr.mxu0 0.0
    %535 = vmatpush1.msra.mxu0 %v509
    %536 = vmatprep.subr.mxu0 0.0
    %537 = vmatpush1.msra.mxu0 %v510
    %538 = vmatprep.subr.mxu0 0.0
    %539 = vmatpush1.msra.mxu0 %v511
    %540 = vmatprep.subr.mxu0 0.0
    %541 = vmatpush1.msra.mxu0 %v512
    %542 = vmatprep.subr.mxu0 0.0
    %543 = vmatpush1.msra.mxu0 %v513
    %544 = vmatprep.subr.mxu0 0.0
    %545 = vmatpush1.msra.mxu0 %v514
    %546 = vmatprep.subr.mxu0 0.0
    %547 = vmatpush1.msra.mxu0 %v515
    %548 = vmatprep.subr.mxu0 0.0
    %549 = vmatpush1.msra.mxu0 %v516
    %550 = vmatprep.subr.mxu0 0.0
    %551 = vmatpush1.msra.mxu0 %v517
    %552 = vmatprep.subr.mxu0 0.0
    %553 = vmatpush1.msra.mxu0 %v518
    %554 = vmatprep.subr.mxu0 0.0
    %555 = vmatpush1.msra.mxu0 %v519
    %556 = vmatprep.subr.mxu0 0.0
    %557 = vmatpush1.msra.mxu0 %v520
    %558 = vmatprep.subr.mxu0 0.0
    %559 = vmatpush1.msra.mxu0 0.0
    %560 = vmatprep.subr.mxu0 0.0
    %561 = vmatpush1.msra.mxu0 0.0
    %562 = vmatprep.subr.mxu0 0.0
    %563 = vmatpush1.msra.mxu0 0.0
    %564 = vmatprep.subr.mxu0 0.0
    %565 = vmatpush1.msra.mxu0 0.0
    %566 = vmatprep.subr.mxu0 0.0
    %567 = vmatpush1.msra.mxu0 0.0
    %568 = vmatprep.subr.mxu0 0.0
    %569 = vmatpush1.msra.mxu0 0.0
    %570 = vmatprep.subr.mxu0 0.0
    %571 = vmatpush1.msra.mxu0 0.0
    %572 = vmatprep.subr.mxu0 0.0
    %573 = vmatpush1.msra.mxu0 0.0
    %574 = vmatprep.subr.mxu0 0.0
    %575 = vmatpush1.msra.mxu0 0.0
    %576 = vmatprep.subr.mxu0 0.0
    %577 = vmatpush1.msra.mxu0 0.0
    %578 = vmatprep.subr.mxu0 0.0
    %579 = vmatpush1.msra.mxu0 0.0
    %580 = vmatprep.subr.mxu0 0.0
    %581 = vmatpush1.msra.mxu0 0.0
    %582 = vmatprep.subr.mxu0 0.0
    %583 = vmatpush1.msra.mxu0 0.0
    %584 = vmatprep.subr.mxu0 0.0
    %585 = vmatpush1.msra.mxu0 0.0
    %586 = vmatprep.subr.mxu0 0.0
    %587 = vmatpush1.msra.mxu0 0.0
    %588 = vmatprep.subr.mxu0 0.0
    %589 = vmatpush1.msra.mxu0 0.0
    %590 = vmatprep.mubr.f32.mxu0 0.0
    %591 = vmatmul.mubr.f32.gmra.mrb[0].mxu0 %v504
    %v592 = vpop.f32.mrb[0].mxu0
    %v593 = vadd.f32 %v525, %v592
    %v594 = vpop.f32.mrb[0].mxu0
    %595 = vdwg.mxu0
    %vm596 = vcmp.gt.f32.partialorder %v593, 0.0
    %v597 = vmul.f32 %v593, 0.01
    %v598 = vsel %vm596, %v593, %v597
    %v599 = vld [vmem:[%s2 + $0x188] sm:$0xff]
    %v600 = vld [vmem:[%s2 + $0x190] sm:$0xff]
    %v601 = vld [vmem:[%s2 + $0x198] sm:$0xff]
    %v602 = vld [vmem:[%s2 + $0x1a0] sm:$0xff]
    %v603 = vld [vmem:[%s2 + $0x1a8] sm:$0xff]
    %v604 = vld [vmem:[%s2 + $0x1b0] sm:$0xff]
    %v605 = vld [vmem:[%s2 + $0x1b8] sm:$0xff]
    %v606 = vld [vmem:[%s2 + $0x1c0] sm:$0xff]
    %v607 = vld [vmem:[%s2 + $0x1c8] sm:$0xff]
    %v608 = vld [vmem:[%s2 + $0x1d0] sm:$0xff]
    %v609 = vld [vmem:[%s2 + $0x1d8] sm:$0xff]
    %v610 = vld [vmem:[%s2 + $0x1e0] sm:$0xff]
    %v611 = vld [vmem:[%s2 + $0x1e8] sm:$0xff]
    %v612 = vld [vmem:[%s2 + $0x1f0] sm:$0xff]
    %v613 = vld [vmem:[%s2 + $0x1f8] sm:$0xff]
    %v614 = vld [vmem:[%s2 + $0x200] sm:$0xff]
    %v615 = vld [vmem:[%s2 + $0x20c] sm:$0x1]
    %v616 = vlaneseq
    %v617 = vshrl.u32 %v616, 7
    %v618 = vsub.s32 0, %v617
    %v619 = vrot.slane %v615, %v618
    %620 = vmatprep.subr.mxu0 0.0
    %621 = vmatpush1.msra.mxu0 %v599
    %622 = vmatprep.subr.mxu0 0.0
    %623 = vmatpush1.msra.mxu0 %v600
    %624 = vmatprep.subr.mxu0 0.0
    %625 = vmatpush1.msra.mxu0 %v601
    %626 = vmatprep.subr.mxu0 0.0
    %627 = vmatpush1.msra.mxu0 %v602
    %628 = vmatprep.subr.mxu0 0.0
    %629 = vmatpush1.msra.mxu0 %v603
    %630 = vmatprep.subr.mxu0 0.0
    %631 = vmatpush1.msra.mxu0 %v604
    %632 = vmatprep.subr.mxu0 0.0
    %633 = vmatpush1.msra.mxu0 %v605
    %634 = vmatprep.subr.mxu0 0.0
    %635 = vmatpush1.msra.mxu0 %v606
    %636 = vmatprep.subr.mxu0 0.0
    %637 = vmatpush1.msra.mxu0 %v607
    %638 = vmatprep.subr.mxu0 0.0
    %639 = vmatpush1.msra.mxu0 %v608
    %640 = vmatprep.subr.mxu0 0.0
    %641 = vmatpush1.msra.mxu0 %v609
    %642 = vmatprep.subr.mxu0 0.0
    %643 = vmatpush1.msra.mxu0 %v610
    %644 = vmatprep.subr.mxu0 0.0
    %645 = vmatpush1.msra.mxu0 %v611
    %646 = vmatprep.subr.mxu0 0.0
    %647 = vmatpush1.msra.mxu0 %v612
    %648 = vmatprep.subr.mxu0 0.0
    %649 = vmatpush1.msra.mxu0 %v613
    %650 = vmatprep.subr.mxu0 0.0
    %651 = vmatpush1.msra.mxu0 %v614
    %652 = vmatprep.subr.mxu0 0.0
    %653 = vmatpush1.msra.mxu0 0.0
    %654 = vmatprep.subr.mxu0 0.0
    %655 = vmatpush1.msra.mxu0 0.0
    %656 = vmatprep.subr.mxu0 0.0
    %657 = vmatpush1.msra.mxu0 0.0
    %658 = vmatprep.subr.mxu0 0.0
    %659 = vmatpush1.msra.mxu0 0.0
    %660 = vmatprep.subr.mxu0 0.0
    %661 = vmatpush1.msra.mxu0 0.0
    %662 = vmatprep.subr.mxu0 0.0
    %663 = vmatpush1.msra.mxu0 0.0
    %664 = vmatprep.subr.mxu0 0.0
    %665 = vmatpush1.msra.mxu0 0.0
    %666 = vmatprep.subr.mxu0 0.0
    %667 = vmatpush1.msra.mxu0 0.0
    %668 = vmatprep.subr.mxu0 0.0
    %669 = vmatpush1.msra.mxu0 0.0
    %670 = vmatprep.subr.mxu0 0.0
    %671 = vmatpush1.msra.mxu0 0.0
    %672 = vmatprep.subr.mxu0 0.0
    %673 = vmatpush1.msra.mxu0 0.0
    %674 = vmatprep.subr.mxu0 0.0
    %675 = vmatpush1.msra.mxu0 0.0
    %676 = vmatprep.subr.mxu0 0.0
    %677 = vmatpush1.msra.mxu0 0.0
    %678 = vmatprep.subr.mxu0 0.0
    %679 = vmatpush1.msra.mxu0 0.0
    %680 = vmatprep.subr.mxu0 0.0
    %681 = vmatpush1.msra.mxu0 0.0
    %682 = vmatprep.subr.mxu0 0.0
    %683 = vmatpush1.msra.mxu0 0.0
    %684 = vmatprep.mubr.f32.mxu0 0.0
    %685 = vmatmul.mubr.f32.gmra.mrb[0].mxu0 %v598
    %v686 = vpop.f32.mrb[0].mxu0
    %v687 = vadd.f32 %v619, %v686
    %v688 = vpop.f32.mrb[0].mxu0
    %689 = vdwg.mxu0
    %690 = vst [vmem:[#allocation2] sm:$0x3] %v687
    // Predicated region
    $region14: #{forward.1} parent=1 // pred_check
      _
    $region15: #{forward.1} parent=1 // pred_check_branch
      %692 = sbr.rel (0) target = $region17
    $region16: #{forward.1} parent=1 // pred_region
      %s694 = ssub.s32 32, 32
      %695 = vsyncadd [#allocation3], %s694
      %s697 = sshll.u32 [#allocation2], 4
      %s698 = int_to_ptr.vmem [resolvable:$true] %s697
      %700 = dma.vmem_to_hbm [thread:$0]  %s698, 32, %s3, [#allocation3]
    $region17: #{forward.1} parent=1 // pred_fallthru
      _
    // Predicated region
    $region18: #{forward.1} parent=1 // pred_check
      _
    $region19: #{forward.1} parent=1 // pred_check_branch
      %702 = sbr.rel (0) target = $region21
    $region20: #{forward.1} parent=1 // pred_region
      %703 = dma.done [#allocation3], 32
    $region21: #{forward.1} parent=1 // pred_fallthru
      _
    %704 = vsyncpa [#allocation3], 1

</llo_original>
